<compile_context>
chip_gen: v7x
topology: tpu7x:2x2x1
jax: 0.10.0
libtpu: 0.0.40
codegen_flags: <defaults>
</compile_context>

<pallas_src>
import jax
import jax.numpy as jnp
from jax.experimental import pallas as pl
from jax.experimental.pallas import tpu as pltpu


def _round_up(x, m):
    return ((x + m - 1) // m) * m


def _sublane(dtype):
    # Sub-32-bit dtypes pack along sublanes: f32 -> 8, bf16 -> 16, int8 -> 32.
    return 8 * (4 // jnp.dtype(dtype).itemsize)


def _make_latent_kernel(num_layers, half, out_pad, compute_dtype):
    """Kernel body for an MLP with `num_layers` Linear layers.

    Ref order:
      r_ref, one_hot_ref,
      w0_r, w0_c,                      (split layer-0 weight, cols padded to P)
      [w_stack],                       ((L-1, P, P) stacked weights, if L > 1)
      b_stack,                         ((L, P) stacked biases)
      out_ref                          ((tile_rows, out_pad) fused mean|std)
    """

    def kernel(*refs):
        r_ref, oh_ref, w0r_ref, w0c_ref = refs[0], refs[1], refs[2], refs[3]
        if num_layers > 1:
            w_stack_ref, b_ref, out_ref = refs[4], refs[5], refs[6]
        else:
            b_ref, out_ref = refs[4], refs[5]

        # Layer 0: fused "concat" matmul
        #   [r | one_hot] @ W0  ==  r @ W0[:dim_r] + one_hot @ W0[dim_r:]
        h = (jnp.dot(r_ref[...], w0r_ref[...], preferred_element_type=jnp.float32)
             + jnp.dot(oh_ref[...], w0c_ref[...], preferred_element_type=jnp.float32)
             + b_ref[0:1, :].astype(jnp.float32))

        for li in range(1, num_layers):
            # ReLU in f32, then cast to the compute dtype so the MXU runs at
            # its bf16-native rate; accumulation stays in f32.
            h = jnp.maximum(h, 0.0).astype(compute_dtype)
            h = (jnp.dot(h, w_stack_ref[li - 1],
                         preferred_element_type=jnp.float32)
                 + b_ref[li:li + 1, :].astype(jnp.float32))

        h = h[:, :out_pad]
        # Fused lane-dense output: lanes < half keep mean, lanes >= half get
        # exp(log_std).  exp runs on the EUP over the full vreg (padding lanes
        # hold zeros -> exp(0)=1, discarded by the wrapper slice).
        lane = jax.lax.broadcasted_iota(jnp.int32, h.shape, 1)
        out_ref[...] = jnp.where(lane < half, h, jnp.exp(h)).astype(out_ref.dtype)

    return kernel


def latent_network_forward(r_repeated, one_hot, weights, biases, *,
                           compute_dtype=jnp.bfloat16, out_dtype=None,
                           tile_rows=None):
    """Pallas implementation of LatentNetwork.forward.

    Args:
      r_repeated: (B, dim_r) aggregate r, repeated over samples.
      one_hot:    (B, num_classes) one-hot class encoding.
      weights:    list of (d_in, d_out) arrays (transposed vs. torch Linear).
      biases:     list of (1, d_out) arrays.
      compute_dtype: dtype fed to the MXU (accumulation always f32).
      out_dtype:  dtype of the returned mean/std (defaults to compute_dtype).

    Returns:
      (mean, std): each (B, latent_dim // 2) in out_dtype.
    """
    B, dim_r = r_repeated.shape
    _, num_classes = one_hot.shape
    num_layers = len(weights)
    assert weights[0].shape[0] == dim_r + num_classes
    latent_dim = weights[-1].shape[1]
    assert latent_dim % 2 == 0
    half = latent_dim // 2

    cdtype = jnp.dtype(compute_dtype)
    odtype = cdtype if out_dtype is None else jnp.dtype(out_dtype)
    sub = max(_sublane(cdtype), _sublane(odtype))

    out_widths = [w.shape[1] for w in weights]
    pad_widths = [_round_up(max(d, 128), 128) for d in out_widths]   # lane-dense
    P = max(pad_widths)            # common padded width for hidden/output lanes
    out_pad = pad_widths[-1]

    # ---- pad / stack parameters once, outside the kernel (tiny, ~KBs) -------
    def _pad2(w, rows, cols):
        w = w.astype(cdtype)
        return jnp.pad(w, ((0, rows - w.shape[0]), (0, cols - w.shape[1])))

    w0 = weights[0]
    w0_r = _pad2(w0[:dim_r], dim_r, P)
    w0_c = _pad2(w0[dim_r:], num_classes, P)
    w_stack = None
    if num_layers > 1:
        w_stack = jnp.stack([_pad2(weights[li], P, P)
                             for li in range(1, num_layers)])        # (L-1, P, P)
    b_stack = jnp.stack([
        jnp.pad(biases[li].reshape(-1).astype(cdtype), (0, P - out_widths[li]))
        for li in range(num_layers)])                                # (L, P)

    # ---- balanced row tiling -------------------------------------------------
    if tile_rows is None:
        target = 2048                           # amortize per-step overhead
        num_tiles = pl.cdiv(B, target)
        if num_tiles < 2 and B >= 2 * sub:
            num_tiles = 2                       # >=2 steps feeds both v7x TCs
        tile_rows = pl.cdiv(B, num_tiles)
    tile_rows = min(_round_up(tile_rows, sub), _round_up(B, sub))
    B_pad = _round_up(B, tile_rows)

    r_c = r_repeated.astype(cdtype)
    oh_c = one_hot.astype(cdtype)
    if B_pad != B:
        r_c = jnp.pad(r_c, ((0, B_pad - B), (0, 0)))
        oh_c = jnp.pad(oh_c, ((0, B_pad - B), (0, 0)))
    grid = (B_pad // tile_rows,)

    in_specs = [
        pl.BlockSpec((tile_rows, dim_r), lambda i: (i, 0)),
        pl.BlockSpec((tile_rows, num_classes), lambda i: (i, 0)),
        # Weight / bias blocks: constant index_map -> fetched once, resident.
        pl.BlockSpec(w0_r.shape, lambda i: (0, 0)),
        pl.BlockSpec(w0_c.shape, lambda i: (0, 0)),
    ]
    operands = [r_c, oh_c, w0_r, w0_c]
    if num_layers > 1:
        in_specs.append(pl.BlockSpec(w_stack.shape, lambda i: (0, 0, 0)))
        operands.append(w_stack)
    in_specs.append(pl.BlockSpec(b_stack.shape, lambda i: (0, 0)))
    operands.append(b_stack)

    out_specs = pl.BlockSpec((tile_rows, out_pad), lambda i: (i, 0))
    out_shape = jax.ShapeDtypeStruct((B_pad, out_pad), odtype)   # explicit dtype

    kernel = _make_latent_kernel(num_layers, half, out_pad, cdtype)

    fused = pl.pallas_call(
        kernel,
        out_shape=out_shape,
        grid_spec=pltpu.PrefetchScalarGridSpec(
            num_scalar_prefetch=0,
            grid=grid,
            in_specs=in_specs,
            out_specs=out_specs,
        ),
        compiler_params=pltpu.CompilerParams(
            dimension_semantics=("parallel",)),
    )(*operands)

    mean = fused[:B, :half]
    std = fused[:B, half:latent_dim]
    return mean, std


def _reference_forward(r_repeated, one_hot, weights, biases):
    """Plain-JAX f32 reference matching the PyTorch module semantics."""
    x = jnp.concatenate([r_repeated, one_hot], axis=-1)
    h = x
    for i, (w, b) in enumerate(zip(weights, biases)):
        h = h @ w + b[0]
        if i < len(weights) - 1:
            h = jnp.maximum(h, 0.0)
    half = weights[-1].shape[1] // 2
    return h[:, :half], jnp.exp(h[:, half:])


if __name__ == "__main__":
    # Small, module-consistent shapes:
    #   dim_r = 24, num_classes = 8 -> layer widths [32, 64, 32]
    #   latent_dim = 32 (even) -> mean/std each 16-dim
    #   batch = 2, num_samples = 8 -> B = 16 rows.
    dim_r = 24
    num_classes = 8
    layer_widths = [dim_r + num_classes, 64, 32]
    batch, num_samples = 2, 8
    B = batch * num_samples

    key = jax.random.PRNGKey(0)
    k_r, k_oh, *k_params = jax.random.split(key, 2 + 2 * (len(layer_widths) - 1))

    r_agg = jax.random.normal(k_r, (batch, dim_r), dtype=jnp.float32)
    r_repeated = jnp.repeat(r_agg, num_samples, axis=0)              # (B, dim_r)
    class_ids = jax.random.randint(k_oh, (B,), 0, num_classes)
    one_hot = jax.nn.one_hot(class_ids, num_classes, dtype=jnp.float32)

    # PyTorch-Linear-like uniform fan-in init, stored as (d_in, d_out).
    weights, biases = [], []
    for li in range(len(layer_widths) - 1):
        d_in, d_out = layer_widths[li], layer_widths[li + 1]
        bound = 1.0 / (d_in ** 0.5)
        w = jax.random.uniform(k_params[2 * li], (d_in, d_out),
                               minval=-bound, maxval=bound, dtype=jnp.float32)
        b = jax.random.uniform(k_params[2 * li + 1], (1, d_out),
                               minval=-bound, maxval=bound, dtype=jnp.float32)
        weights.append(w)
        biases.append(b)

    ref_mean, ref_std = _reference_forward(r_repeated, one_hot, weights, biases)

    # Strict-accuracy path (f32 compute + f32 output).
    mean32, std32 = latent_network_forward(
        r_repeated, one_hot, weights, biases,
        compute_dtype=jnp.float32, out_dtype=jnp.float32)
    jax.block_until_ready((mean32, std32))
    assert mean32.shape == (B, layer_widths[-1] // 2)
    assert std32.shape == (B, layer_widths[-1] // 2)
    assert jnp.allclose(mean32, ref_mean, atol=1e-5, rtol=1e-5)
    assert jnp.allclose(std32, ref_std, atol=1e-5, rtol=1e-5)

    # Fast path (default): bf16 MXU + bf16 writeback, f32 accumulation.
    mean_bf, std_bf = latent_network_forward(r_repeated, one_hot, weights, biases)
    jax.block_until_ready((mean_bf, std_bf))
    assert mean_bf.dtype == jnp.bfloat16 and std_bf.dtype == jnp.bfloat16
    assert mean_bf.shape == (B, layer_widths[-1] // 2)
    assert std_bf.shape == (B, layer_widths[-1] // 2)
    assert jnp.allclose(mean_bf.astype(jnp.float32), ref_mean, atol=5e-2, rtol=5e-2)
    assert jnp.allclose(std_bf.astype(jnp.float32), ref_std, atol=5e-2, rtol=5e-2)

    print("KERNEL_OK")
</pallas_src>

<mosaic_0001>
module attributes {stable_mosaic.version = 11 : i64} {
  func.func @kernel(%arg0: i32, %arg1: memref<8x24xf32, #tpu.memory_space<vmem>>, %arg2: memref<8x8xf32, #tpu.memory_space<vmem>>, %arg3: memref<24x128xf32, #tpu.memory_space<vmem>>, %arg4: memref<8x128xf32, #tpu.memory_space<vmem>>, %arg5: memref<1x128x128xf32, #tpu.memory_space<vmem>>, %arg6: memref<2x128xf32, #tpu.memory_space<vmem>>, %arg7: memref<8x128xf32, #tpu.memory_space<vmem>>) attributes {dimension_semantics = [#tpu.dimension_semantics<parallel>], iteration_bounds = array<i64: 2>, scalar_prefetch = 0 : i64, scratch_operands = 0 : i64, tpu.core_type = #tpu.core_type<tc>, window_params = [{transform_indices = @transform_0, window_bounds = array<i64: 8, 24>}, {transform_indices = @transform_1, window_bounds = array<i64: 8, 8>}, {pipeline_mode = #tpu.pipeline_mode<synchronous>, transform_indices = @transform_2, window_bounds = array<i64: 24, 128>}, {pipeline_mode = #tpu.pipeline_mode<synchronous>, transform_indices = @transform_3, window_bounds = array<i64: 8, 128>}, {pipeline_mode = #tpu.pipeline_mode<synchronous>, transform_indices = @transform_4, window_bounds = array<i64: 1, 128, 128>}, {pipeline_mode = #tpu.pipeline_mode<synchronous>, transform_indices = @transform_5, window_bounds = array<i64: 2, 128>}, {transform_indices = @transform_6, window_bounds = array<i64: 8, 128>}]} {
    %c0 = arith.constant 0 : index
    %c0_0 = arith.constant 0 : index
    %0 = vector.load %arg1[%c0, %c0_0] : memref<8x24xf32, #tpu.memory_space<vmem>>, vector<8x24xf32>
    %c0_1 = arith.constant 0 : index
    %c0_2 = arith.constant 0 : index
    %1 = vector.load %arg3[%c0_1, %c0_2] : memref<24x128xf32, #tpu.memory_space<vmem>>, vector<24x128xf32>
    %cst = arith.constant dense<0.000000e+00> : vector<8x128xf32>
    %2 = tpu.matmul %0, %1, %cst {dimension_numbers = #tpu.dot_dimension_numbers<[1], [0], [0], [1], [0, 0, 1, 1], [], []>} : vector<8x24xf32>, vector<24x128xf32>, vector<8x128xf32> -> vector<8x128xf32>
    %c0_3 = arith.constant 0 : index
    %c0_4 = arith.constant 0 : index
    %3 = vector.load %arg2[%c0_3, %c0_4] : memref<8x8xf32, #tpu.memory_space<vmem>>, vector<8x8xf32>
    %c0_5 = arith.constant 0 : index
    %c0_6 = arith.constant 0 : index
    %4 = vector.load %arg4[%c0_5, %c0_6] : memref<8x128xf32, #tpu.memory_space<vmem>>, vector<8x128xf32>
    %cst_7 = arith.constant dense<0.000000e+00> : vector<8x128xf32>
    %5 = tpu.matmul %3, %4, %cst_7 {dimension_numbers = #tpu.dot_dimension_numbers<[1], [0], [0], [1], [0, 0, 1, 1], [], []>} : vector<8x8xf32>, vector<8x128xf32>, vector<8x128xf32> -> vector<8x128xf32>
    %6 = arith.addf %2, %5 : vector<8x128xf32>
    %c0_8 = arith.constant 0 : index
    %c0_9 = arith.constant 0 : index
    %7 = vector.load %arg6[%c0_8, %c0_9] : memref<2x128xf32, #tpu.memory_space<vmem>>, vector<1x128xf32>
    %8 = vector.broadcast %7 : vector<1x128xf32> to vector<8x128xf32>
    %9 = arith.addf %6, %8 : vector<8x128xf32>
    %cst_10 = arith.constant 0.000000e+00 : f32
    %10 = vector.broadcast %cst_10 : f32 to vector<8x128xf32>
    %11 = arith.maximumf %9, %10 : vector<8x128xf32>
    %c0_11 = arith.constant 0 : index
    %c0_12 = arith.constant 0 : index
    %c0_13 = arith.constant 0 : index
    %12 = vector.load %arg5[%c0_11, %c0_12, %c0_13] : memref<1x128x128xf32, #tpu.memory_space<vmem>>, vector<1x128x128xf32>
    %13 = vector.shape_cast %12 : vector<1x128x128xf32> to vector<128x128xf32>
    %cst_14 = arith.constant dense<0.000000e+00> : vector<8x128xf32>
    %14 = tpu.matmul %11, %13, %cst_14 {dimension_numbers = #tpu.dot_dimension_numbers<[1], [0], [0], [1], [0, 0, 1, 1], [], []>} : vector<8x128xf32>, vector<128x128xf32>, vector<8x128xf32> -> vector<8x128xf32>
    %c1 = arith.constant 1 : index
    %c0_15 = arith.constant 0 : index
    %15 = vector.load %arg6[%c1, %c0_15] : memref<2x128xf32, #tpu.memory_space<vmem>>, vector<1x128xf32>
    %16 = vector.broadcast %15 : vector<1x128xf32> to vector<8x128xf32>
    %17 = arith.addf %14, %16 : vector<8x128xf32>
    %18 = tpu.iota {dimensions = array<i32: 1>} : vector<8x128xi32>
    %c16_i32 = arith.constant 16 : i32
    %19 = vector.broadcast %c16_i32 : i32 to vector<8x128xi32>
    %20 = arith.cmpi slt, %18, %19 : vector<8x128xi32>
    %21 = math.exp %17 : vector<8x128xf32>
    %22 = arith.select %20, %17, %21 : vector<8x128xi1>, vector<8x128xf32>
    %c0_16 = arith.constant 0 : index
    %c0_17 = arith.constant 0 : index
    %23 = vector.load %arg7[%c0_16, %c0_17] : memref<8x128xf32, #tpu.memory_space<vmem>>, vector<8x128xf32>
    tpu.vector_store %arg7[%c0_16, %c0_17], %22 {strides = array<i32>} : memref<8x128xf32, #tpu.memory_space<vmem>>, vector<8x128xf32>,
    return
  }
  func.func @transform_0(%arg0: i32) -> (i32, i32) {
    %c0_i32 = arith.constant 0 : i32
    %c0_i32_0 = arith.constant 0 : i32
    return %arg0, %c0_i32 : i32, i32
  }
  func.func @transform_1(%arg0: i32) -> (i32, i32) {
    %c0_i32 = arith.constant 0 : i32
    %c0_i32_0 = arith.constant 0 : i32
    return %arg0, %c0_i32 : i32, i32
  }
  func.func @transform_2(%arg0: i32) -> (i32, i32) {
    %c0_i32 = arith.constant 0 : i32
    %c0_i32_0 = arith.constant 0 : i32
    %c0_i32_1 = arith.constant 0 : i32
    return %c0_i32, %c0_i32_0 : i32, i32
  }
  func.func @transform_3(%arg0: i32) -> (i32, i32) {
    %c0_i32 = arith.constant 0 : i32
    %c0_i32_0 = arith.constant 0 : i32
    %c0_i32_1 = arith.constant 0 : i32
    return %c0_i32, %c0_i32_0 : i32, i32
  }
  func.func @transform_4(%arg0: i32) -> (i32, i32, i32) {
    %c0_i32 = arith.constant 0 : i32
    %c0_i32_0 = arith.constant 0 : i32
    %c0_i32_1 = arith.constant 0 : i32
    %c0_i32_2 = arith.constant 0 : i32
    return %c0_i32, %c0_i32_0, %c0_i32_1 : i32, i32, i32
  }
  func.func @transform_5(%arg0: i32) -> (i32, i32) {
    %c0_i32 = arith.constant 0 : i32
    %c0_i32_0 = arith.constant 0 : i32
    %c0_i32_1 = arith.constant 0 : i32
    return %c0_i32, %c0_i32_0 : i32, i32
  }
  func.func @transform_6(%arg0: i32) -> (i32, i32) {
    %c0_i32 = arith.constant 0 : i32
    %c0_i32_0 = arith.constant 0 : i32
    return %arg0, %c0_i32 : i32, i32
  }
}

</mosaic_0001>

<llo_original>
// kernel: tpu_custom_call.1
$region0: #{tpu_custom_call.1}
  #allocation0 [shape = 'u32[]', space=smem, size = 0x4, offset = 0x4, fixed_abs, tag = 'smem constant byte address 0x4 - core index']
  #allocation1 [shape = 'u32[144,128]{1,0:T(1,128)}', space=vmem, size = 0x12000, scoped, tag = 'internal scratch']
  %s0 = inlined_call_operand.hbm [shape: f32[16,24], index: 0, kind: input, shape index: {}]
  %s1 = inlined_call_operand.vmem [shape: f32[16,8], index: 1, kind: input, shape index: {}]
  %s2 = inlined_call_operand.vmem [shape: f32[24,128], index: 2, kind: input, shape index: {}]
  %s3 = inlined_call_operand.vmem [shape: f32[8,128], index: 3, kind: input, shape index: {}]
  %s4 = inlined_call_operand.hbm [shape: f32[1,128,128], index: 4, kind: input, shape index: {}]
  %s5 = inlined_call_operand.vmem [shape: f32[2,128], index: 5, kind: input, shape index: {}]
  %s6 = inlined_call_operand.hbm [shape: f32[16,128], index: 6, kind: output, shape index: {}]
  %s7 = sld [smem:[#allocation0]]
  $region65: #{tpu_custom_call.1} parent=0
    _
  %s9 = ssub.s32 1, %s7
  %s10 = scalar_select 0, %s9, %s7
  $region1: #{tpu_custom_call.1} parent=0
    #allocation2 [shape = 'u8[8192]{0}', space=vmem, size = 0x2000, scoped, tag = 'input window, operand 0']
    #allocation3 [shape = 's32[2]{0}', space=sflag, size = 0x8, scoped, tag = 'scoped memory for tpu_custom_call.1']
    #allocation4 [shape = 's32[2]{0}', space=sflag, size = 0x8, scoped, tag = 'scoped memory for tpu_custom_call.1']
    #allocation5 [shape = 'u8[65536]{0}', space=vmem, size = 0x10000, scoped, tag = 'input window, operand 4, single buffered']
    #allocation6 [shape = 's32[1]{0}', space=sflag, size = 0x4, scoped, tag = 'scoped memory for tpu_custom_call.1']
    #allocation7 [shape = 'u8[8192]{0}', space=vmem, size = 0x2000, scoped, tag = 'output window, operand 0']
    %11 = vsyncpa [#allocation3], 0
    %s12 = scalar_lea.sflag [#allocation3], 1
    %13 = vsyncpa %s12, 0
    %14 = vsyncpa [#allocation6], 0
    %15 = vsyncpa [#allocation4], 0
    %s16 = scalar_lea.sflag [#allocation4], 1
    %17 = vsyncpa %s16, 0
    loop: start=0, step=1, limit=4
    $region2: #{tpu_custom_call.1} parent=1 // loop_pre_header
      _
    $region3: #{tpu_custom_call.1} parent=1 // loop_header
      %s19 = sphi 0, %s23
      %p20 = scmp.ge.s32.totalorder %s19, 4
      %s29 = sphi 0, %s31
      %s32 = sphi 0, %s29
      %s33 = sphi 0, %s32
      %s49 = sphi 0, %s33
      %s55 = sphi 0, %s57
      %s58 = sphi 0, %s55
      %s59 = sphi 0, %s58
      %s75 = sphi 0, %s59
      %s79 = sphi 0, %s79
      %s81 = sphi 0, %s79
      %s82 = sphi 0, %s81
      %s96 = sphi 0, %s82
      %s100 = sphi 0, %s100
      %s102 = sphi 0, %s100
      %s103 = sphi 0, %s102
      %s117 = sphi 0, %s103
      %s121 = sphi 0, %s121
      %s123 = sphi 0, %s121
      %s124 = sphi 0, %s123
      %s138 = sphi 0, %s124
      %s142 = sphi 0, %s142
      %s144 = sphi 0, %s142
      %s145 = sphi 0, %s144
      %s159 = sphi 0, %s145
      %s165 = sphi 0, %s167
      %s168 = sphi 0, %s165
      %s169 = sphi 0, %s168
      %s185 = sphi 0, %s169
    $region4: #{tpu_custom_call.1} parent=1 // loop_header_branch
      %22 = sbr.rel (%p20) target = $region8
    $region5: #{tpu_custom_call.1} parent=1 // loop_body
      %s24 = ssub.s32 %s19, 1
      %s25 = ssub.s32 %s19, 2
      %s26 = sadd.s32 %s19, 1
      %s27 = ssub.s32 %s19, %s26
      %p28 = scmp.eq.s32.totalorder %s27, 0
      %s30 = sadd.s32 %s29, 1
      %s31 = scalar_select %p28, %s29, %s30
      %p34 = pneg %p28
      %p35 = scmp.eq.s32.totalorder %s19, 1
      %p36 = por %p34, %p35
      %p37 = scmp.ne.s32.totalorder %s29, %s32
      %p38 = scmp.eq.s32.totalorder %s19, 0
      %p39 = por %p37, %p38
      %p40 = scmp.ne.s32.totalorder %s29, %s32
      %p41 = scmp.eq.s32.totalorder %s24, 1
      %p42 = por %p40, %p41
      %p43 = scmp.ne.s32.totalorder %s32, %s33
      %p44 = scmp.eq.s32.totalorder %s24, 0
      %p45 = por %p43, %p44
      %p46 = scmp.ne.s32.totalorder %s32, %s33
      %p47 = scmp.eq.s32.totalorder %s25, 1
      %p48 = por %p46, %p47
      %p50 = scmp.ne.s32.totalorder %s33, %s49
      %p51 = scmp.eq.s32.totalorder %s25, 0
      %p52 = por %p50, %p51
      %s53 = ssub.s32 %s19, %s26
      %p54 = scmp.eq.s32.totalorder %s53, 0
      %s56 = sadd.s32 %s55, 1
      %s57 = scalar_select %p54, %s55, %s56
      %p60 = pneg %p54
      %p61 = scmp.eq.s32.totalorder %s19, 1
      %p62 = por %p60, %p61
      %p63 = scmp.ne.s32.totalorder %s55, %s58
      %p64 = scmp.eq.s32.totalorder %s19, 0
      %p65 = por %p63, %p64
      %p66 = scmp.ne.s32.totalorder %s55, %s58
      %p67 = scmp.eq.s32.totalorder %s24, 1
      %p68 = por %p66, %p67
      %p69 = scmp.ne.s32.totalorder %s58, %s59
      %p70 = scmp.eq.s32.totalorder %s24, 0
      %p71 = por %p69, %p70
      %p72 = scmp.ne.s32.totalorder %s58, %s59
      %p73 = scmp.eq.s32.totalorder %s25, 1
      %p74 = por %p72, %p73
      %p76 = scmp.ne.s32.totalorder %s59, %s75
      %p77 = scmp.eq.s32.totalorder %s25, 0
      %p78 = por %p76, %p77
      %s80 = sadd.s32 %s79, 1
      %p83 = scmp.eq.s32.totalorder %s19, 1
      %p84 = scmp.ne.s32.totalorder %s79, %s81
      %p85 = scmp.eq.s32.totalorder %s19, 0
      %p86 = por %p84, %p85
      %p87 = scmp.ne.s32.totalorder %s79, %s81
      %p88 = scmp.eq.s32.totalorder %s24, 1
      %p89 = por %p87, %p88
      %p90 = scmp.ne.s32.totalorder %s81, %s82
      %p91 = scmp.eq.s32.totalorder %s24, 0
      %p92 = por %p90, %p91
      %p93 = scmp.ne.s32.totalorder %s81, %s82
      %p94 = scmp.eq.s32.totalorder %s25, 1
      %p95 = por %p93, %p94
      %p97 = scmp.ne.s32.totalorder %s82, %s96
      %p98 = scmp.eq.s32.totalorder %s25, 0
      %p99 = por %p97, %p98
      %s101 = sadd.s32 %s100, 1
      %p104 = scmp.eq.s32.totalorder %s19, 1
      %p105 = scmp.ne.s32.totalorder %s100, %s102
      %p106 = scmp.eq.s32.totalorder %s19, 0
      %p107 = por %p105, %p106
      %p108 = scmp.ne.s32.totalorder %s100, %s102
      %p109 = scmp.eq.s32.totalorder %s24, 1
      %p110 = por %p108, %p109
      %p111 = scmp.ne.s32.totalorder %s102, %s103
      %p112 = scmp.eq.s32.totalorder %s24, 0
      %p113 = por %p111, %p112
      %p114 = scmp.ne.s32.totalorder %s102, %s103
      %p115 = scmp.eq.s32.totalorder %s25, 1
      %p116 = por %p114, %p115
      %p118 = scmp.ne.s32.totalorder %s103, %s117
      %p119 = scmp.eq.s32.totalorder %s25, 0
      %p120 = por %p118, %p119
      %s122 = sadd.s32 %s121, 1
      %p125 = scmp.eq.s32.totalorder %s19, 1
      %p126 = scmp.ne.s32.totalorder %s121, %s123
      %p127 = scmp.eq.s32.totalorder %s19, 0
      %p128 = por %p126, %p127
      %p129 = scmp.ne.s32.totalorder %s121, %s123
      %p130 = scmp.eq.s32.totalorder %s24, 1
      %p131 = por %p129, %p130
      %p132 = scmp.ne.s32.totalorder %s123, %s124
      %p133 = scmp.eq.s32.totalorder %s24, 0
      %p134 = por %p132, %p133
      %p135 = scmp.ne.s32.totalorder %s123, %s124
      %p136 = scmp.eq.s32.totalorder %s25, 1
      %p137 = por %p135, %p136
      %p139 = scmp.ne.s32.totalorder %s124, %s138
      %p140 = scmp.eq.s32.totalorder %s25, 0
      %p141 = por %p139, %p140
      %s143 = sadd.s32 %s142, 1
      %p146 = scmp.eq.s32.totalorder %s19, 1
      %p147 = scmp.ne.s32.totalorder %s142, %s144
      %p148 = scmp.eq.s32.totalorder %s19, 0
      %p149 = por %p147, %p148
      %p150 = scmp.ne.s32.totalorder %s142, %s144
      %p151 = scmp.eq.s32.totalorder %s24, 1
      %p152 = por %p150, %p151
      %p153 = scmp.ne.s32.totalorder %s144, %s145
      %p154 = scmp.eq.s32.totalorder %s24, 0
      %p155 = por %p153, %p154
      %p156 = scmp.ne.s32.totalorder %s144, %s145
      %p157 = scmp.eq.s32.totalorder %s25, 1
      %p158 = por %p156, %p157
      %p160 = scmp.ne.s32.totalorder %s145, %s159
      %p161 = scmp.eq.s32.totalorder %s25, 0
      %p162 = por %p160, %p161
      %s163 = ssub.s32 %s19, %s26
      %p164 = scmp.eq.s32.totalorder %s163, 0
      %s166 = sadd.s32 %s165, 1
      %s167 = scalar_select %p164, %s165, %s166
      %p170 = pneg %p164
      %p171 = scmp.eq.s32.totalorder %s19, 1
      %p172 = por %p170, %p171
      %p173 = scmp.ne.s32.totalorder %s165, %s168
      %p174 = scmp.eq.s32.totalorder %s19, 0
      %p175 = por %p173, %p174
      %p176 = scmp.ne.s32.totalorder %s165, %s168
      %p177 = scmp.eq.s32.totalorder %s24, 1
      %p178 = por %p176, %p177
      %p179 = scmp.ne.s32.totalorder %s168, %s169
      %p180 = scmp.eq.s32.totalorder %s24, 0
      %p181 = por %p179, %p180
      %p182 = scmp.ne.s32.totalorder %s168, %s169
      %p183 = scmp.eq.s32.totalorder %s25, 1
      %p184 = por %p182, %p183
      %p186 = scmp.ne.s32.totalorder %s169, %s185
      %p187 = scmp.eq.s32.totalorder %s25, 0
      %p188 = por %p186, %p187
      %p189 = scmp.le.s32.totalorder 1, %s19
      %p190 = scmp.lt.s32.totalorder %s19, 3
      %p191 = pnand %p189, %p190
      %p192 = pneg %p191
      // Predicated region
      $region9: #{tpu_custom_call.1} parent=5 // pred_check
        _
      $region10: #{tpu_custom_call.1} parent=5 // pred_check_branch
        %194 = sbr.rel (%p191) target = $region12
      $region11: #{tpu_custom_call.1} parent=5 // pred_region
        %s195 = ssub.s32 %s19, 1
        // Predicated region
        $region13: #{tpu_custom_call.1} parent=11 // pred_check
          %p196 = pneg %p92
        $region14: #{tpu_custom_call.1} parent=11 // pred_check_branch
          %198 = sbr.rel (%p196) target = $region16
        $region15: #{tpu_custom_call.1} parent=11 // pred_region
          _
        $region16: #{tpu_custom_call.1} parent=11 // pred_fallthru
          _
        // Predicated region
        $region17: #{tpu_custom_call.1} parent=11 // pred_check
          %p199 = pneg %p113
        $region18: #{tpu_custom_call.1} parent=11 // pred_check_branch
          %201 = sbr.rel (%p199) target = $region20
        $region19: #{tpu_custom_call.1} parent=11 // pred_region
          _
        $region20: #{tpu_custom_call.1} parent=11 // pred_fallthru
          _
        // Predicated region
        $region21: #{tpu_custom_call.1} parent=11 // pred_check
          %p202 = pneg %p134
        $region22: #{tpu_custom_call.1} parent=11 // pred_check_branch
          %204 = sbr.rel (%p202) target = $region24
        $region23: #{tpu_custom_call.1} parent=11 // pred_region
          %s206 = ssub.s32 2048, 2048
          %207 = vsyncadd [#allocation6], %s206
          %s208 = sshll.u32 [#allocation5], 4
          %s209 = int_to_ptr.vmem [resolvable:$true] %s208
          %214 = dma.hbm_to_vmem [thread:$0]  %s4, 2048, %s209, [#allocation6], 128, 128, 8
        $region24: #{tpu_custom_call.1} parent=11 // pred_fallthru
          _
        // Predicated region
        $region25: #{tpu_custom_call.1} parent=11 // pred_check
          %p215 = pneg %p155
        $region26: #{tpu_custom_call.1} parent=11 // pred_check_branch
          %217 = sbr.rel (%p215) target = $region28
        $region27: #{tpu_custom_call.1} parent=11 // pred_region
          _
        $region28: #{tpu_custom_call.1} parent=11 // pred_fallthru
          _
      $region12: #{tpu_custom_call.1} parent=5 // pred_fallthru
        _
      %p218 = scmp.lt.s32.totalorder %s19, 2
      // Predicated region
      $region29: #{tpu_custom_call.1} parent=5 // pred_check
        %p219 = pneg %p218
      $region30: #{tpu_custom_call.1} parent=5 // pred_check_branch
        %221 = sbr.rel (%p219) target = $region32
      $region31: #{tpu_custom_call.1} parent=5 // pred_region
        // Predicated region
        $region33: #{tpu_custom_call.1} parent=31 // pred_check
          %p222 = pneg %p39
        $region34: #{tpu_custom_call.1} parent=31 // pred_check_branch
          %224 = sbr.rel (%p222) target = $region36
        $region35: #{tpu_custom_call.1} parent=31 // pred_region
          %s225 = sand.u32 %s29, 1
          %s226 = scalar_lea.sflag [#allocation3], %s225
          %s227 = sand.u32 %s29, 1
          %s228 = smul.addr %s227, 8
          %s229 = scalar_lea.vmem [#allocation2], %s228
          %s231 = ssub.s32 128, 128
          %232 = vsyncadd %s226, %s231
          %s233 = smul.addr %s19, 128
          %s234 = scalar_lea.hbm %s0, %s233
          %s236 = sshll.u32 %s229, 4
          %s237 = int_to_ptr.vmem [resolvable:$true] %s236
          %239 = dma.hbm_to_vmem [thread:$0]  %s234, 128, %s237, %s226
        $region36: #{tpu_custom_call.1} parent=31 // pred_fallthru
          _
        // Predicated region
        $region37: #{tpu_custom_call.1} parent=31 // pred_check
          %p240 = pneg %p65
        $region38: #{tpu_custom_call.1} parent=31 // pred_check_branch
          %242 = sbr.rel (%p240) target = $region40
        $region39: #{tpu_custom_call.1} parent=31 // pred_region
          %p243 = scmp.lt.s32.totalorder %s19, 1
          %s244 = scalar_select %p243, %s19, 1
          %s245 = smul.addr %s244, 8
          %s246 = scalar_lea.vmem %s1, %s245
        $region40: #{tpu_custom_call.1} parent=31 // pred_fallthru
          _
      $region32: #{tpu_custom_call.1} parent=5 // pred_fallthru
        _
      %p247 = scmp.le.s32.totalorder 1, %s19
      %p248 = scmp.lt.s32.totalorder %s19, 3
      %p249 = pnand %p247, %p248
      %p250 = pneg %p249
      // Predicated region
      $region41: #{tpu_custom_call.1} parent=5 // pred_check
        _
      $region42: #{tpu_custom_call.1} parent=5 // pred_check_branch
        %252 = sbr.rel (%p249) target = $region44
      $region43: #{tpu_custom_call.1} parent=5 // pred_region
        %s253 = ssub.s32 %s19, 1
        %s254 = sand.u32 %s32, 1
        %s255 = scalar_lea.sflag [#allocation3], %s254
        %s256 = sand.u32 %s32, 1
        %s257 = smul.addr %s256, 8
        %s258 = scalar_lea.vmem [#allocation2], %s257
        // Predicated region
        $region45: #{tpu_custom_call.1} parent=43 // pred_check
          %p259 = pneg %p45
        $region46: #{tpu_custom_call.1} parent=43 // pred_check_branch
          %261 = sbr.rel (%p259) target = $region48
        $region47: #{tpu_custom_call.1} parent=43 // pred_region
          %262 = dma.done %s255, 128
        $region48: #{tpu_custom_call.1} parent=43 // pred_fallthru
          _
        // Predicated region
        $region49: #{tpu_custom_call.1} parent=43 // pred_check
          %p263 = pneg %p134
        $region50: #{tpu_custom_call.1} parent=43 // pred_check_branch
          %265 = sbr.rel (%p263) target = $region52
        $region51: #{tpu_custom_call.1} parent=43 // pred_region
          %266 = dma.done [#allocation6], 2048
        $region52: #{tpu_custom_call.1} parent=43 // pred_fallthru
          _
        %s267 = sand.u32 %s32, 1
        %s268 = scalar_lea.sflag [#allocation3], %s267
        %s269 = sand.u32 %s32, 1
        %s270 = smul.addr %s269, 8
        %s271 = scalar_lea.vmem [#allocation2], %s270
        %p272 = pneg %p45
        %p273 = pneg %p42
        %p274 = scmp.lt.s32.totalorder %s24, 1
        %s275 = scalar_select %p274, %s24, 1
        %s276 = smul.addr %s275, 8
        %s277 = scalar_lea.vmem %s1, %s276
        %p278 = pneg %p71
        %p279 = pneg %p68
        %p280 = pneg %p92
        %p281 = pneg %p89
        %p282 = pneg %p113
        %p283 = pneg %p110
        %p284 = pneg %p134
        %p285 = pneg %p131
        %p286 = pneg %p155
        %p287 = pneg %p152
        %p288 = pneg %p181
        %p289 = pneg %p178
        %s290 = sand.u32 %s168, 1
        %s291 = scalar_lea.sflag [#allocation4], %s290
        %s292 = sand.u32 %s168, 1
        %s293 = smul.addr %s292, 8
        %s294 = scalar_lea.vmem [#allocation7], %s293
        %p295 = scmp.lt.s32.totalorder %s24, 1
        %s296 = scalar_select %p295, %s24, 1
        %s297 = smul.addr %s296, 8
        %s298 = scalar_lea.vmem %s1, %s297
        %v299 = vld [vmem:[%s258] sm:$0xff]
        %v300 = vld [vmem:[%s2] sm:$0xff]
        %v301 = vld [vmem:[%s2 + $0x8] sm:$0xff]
        %v302 = vld [vmem:[%s2 + $0x10] sm:$0xff]
        %v303 = vld [vmem:[%s298] sm:$0xff]
        %v304 = vld [vmem:[%s3] sm:$0xff]
        %vm305 = vcmask 64512
        %v307 = vsel %vm305, %v303, 0
        %309 = vmatprep.subr.mxu0 0.0
        %310 = vmatpush1.msra.mxu0 %v304
        %311 = vmatprep.subr.mxu0 0.0
        %312 = vmatpush1.msra.mxu0 0.0
        %313 = vmatprep.subr.mxu0 0.0
        %314 = vmatpush1.msra.mxu0 0.0
        %315 = vmatprep.subr.mxu0 0.0
        %316 = vmatpush1.msra.mxu0 0.0
        %317 = vmatprep.subr.mxu0 0.0
        %318 = vmatpush1.msra.mxu0 0.0
        %319 = vmatprep.subr.mxu0 0.0
        %320 = vmatpush1.msra.mxu0 0.0
        %321 = vmatprep.subr.mxu0 0.0
        %322 = vmatpush1.msra.mxu0 0.0
        %323 = vmatprep.subr.mxu0 0.0
        %324 = vmatpush1.msra.mxu0 0.0
        %325 = vmatprep.subr.mxu0 0.0
        %326 = vmatpush1.msra.mxu0 0.0
        %327 = vmatprep.subr.mxu0 0.0
        %328 = vmatpush1.msra.mxu0 0.0
        %329 = vmatprep.subr.mxu0 0.0
        %330 = vmatpush1.msra.mxu0 0.0
        %331 = vmatprep.subr.mxu0 0.0
        %332 = vmatpush1.msra.mxu0 0.0
        %333 = vmatprep.subr.mxu0 0.0
        %334 = vmatpush1.msra.mxu0 0.0
        %335 = vmatprep.subr.mxu0 0.0
        %336 = vmatpush1.msra.mxu0 0.0
        %337 = vmatprep.subr.mxu0 0.0
        %338 = vmatpush1.msra.mxu0 0.0
        %339 = vmatprep.subr.mxu0 0.0
        %340 = vmatpush1.msra.mxu0 0.0
        %341 = vmatprep.subr.mxu0 0.0
        %342 = vmatpush1.msra.mxu0 0.0
        %343 = vmatprep.subr.mxu0 0.0
        %344 = vmatpush1.msra.mxu0 0.0
        %345 = vmatprep.subr.mxu0 0.0
        %346 = vmatpush1.msra.mxu0 0.0
        %347 = vmatprep.subr.mxu0 0.0
        %348 = vmatpush1.msra.mxu0 0.0
        %349 = vmatprep.subr.mxu0 0.0
        %350 = vmatpush1.msra.mxu0 0.0
        %351 = vmatprep.subr.mxu0 0.0
        %352 = vmatpush1.msra.mxu0 0.0
        %353 = vmatprep.subr.mxu0 0.0
        %354 = vmatpush1.msra.mxu0 0.0
        %355 = vmatprep.subr.mxu0 0.0
        %356 = vmatpush1.msra.mxu0 0.0
        %357 = vmatprep.subr.mxu0 0.0
        %358 = vmatpush1.msra.mxu0 0.0
        %359 = vmatprep.subr.mxu0 0.0
        %360 = vmatpush1.msra.mxu0 0.0
        %361 = vmatprep.subr.mxu0 0.0
        %362 = vmatpush1.msra.mxu0 0.0
        %363 = vmatprep.subr.mxu0 0.0
        %364 = vmatpush1.msra.mxu0 0.0
        %365 = vmatprep.subr.mxu0 0.0
        %366 = vmatpush1.msra.mxu0 0.0
        %367 = vmatprep.subr.mxu0 0.0
        %368 = vmatpush1.msra.mxu0 0.0
        %369 = vmatprep.subr.mxu0 0.0
        %370 = vmatpush1.msra.mxu0 0.0
        %371 = vmatprep.subr.mxu0 0.0
        %372 = vmatpush1.msra.mxu0 0.0
        %373 = vmatprep.mubr.f32.mxu0 0.0
        %374 = vmatmul.mubr.f32.gmra.mrb[0].mxu0 %v307
        %v375 = vpop.f32.mrb[0].mxu0
        %v376 = vadd.f32 0.0, %v375
        %v377 = vpop.f32.mrb[0].mxu0
        %378 = vdwg.mxu0
        %vm379 = vcmask 195584
        %v381 = vsel %vm379, %v299, 0
        %383 = vmatprep.subr.mxu0 0.0
        %384 = vmatpush1.msra.mxu0 %v300
        %385 = vmatprep.subr.mxu0 0.0
        %386 = vmatpush1.msra.mxu0 %v301
        %387 = vmatprep.subr.mxu0 0.0
        %388 = vmatpush1.msra.mxu0 %v302
        %389 = vmatprep.subr.mxu0 0.0
        %390 = vmatpush1.msra.mxu0 0.0
        %391 = vmatprep.subr.mxu0 0.0
        %392 = vmatpush1.msra.mxu0 0.0
        %393 = vmatprep.subr.mxu0 0.0
        %394 = vmatpush1.msra.mxu0 0.0
        %395 = vmatprep.subr.mxu0 0.0
        %396 = vmatpush1.msra.mxu0 0.0
        %397 = vmatprep.subr.mxu0 0.0
        %398 = vmatpush1.msra.mxu0 0.0
        %399 = vmatprep.subr.mxu0 0.0
        %400 = vmatpush1.msra.mxu0 0.0
        %401 = vmatprep.subr.mxu0 0.0
        %402 = vmatpush1.msra.mxu0 0.0
        %403 = vmatprep.subr.mxu0 0.0
        %404 = vmatpush1.msra.mxu0 0.0
        %405 = vmatprep.subr.mxu0 0.0
        %406 = vmatpush1.msra.mxu0 0.0
        %407 = vmatprep.subr.mxu0 0.0
        %408 = vmatpush1.msra.mxu0 0.0
        %409 = vmatprep.subr.mxu0 0.0
        %410 = vmatpush1.msra.mxu0 0.0
        %411 = vmatprep.subr.mxu0 0.0
        %412 = vmatpush1.msra.mxu0 0.0
        %413 = vmatprep.subr.mxu0 0.0
        %414 = vmatpush1.msra.mxu0 0.0
        %415 = vmatprep.subr.mxu0 0.0
        %416 = vmatpush1.msra.mxu0 0.0
        %417 = vmatprep.subr.mxu0 0.0
        %418 = vmatpush1.msra.mxu0 0.0
        %419 = vmatprep.subr.mxu0 0.0
        %420 = vmatpush1.msra.mxu0 0.0
        %421 = vmatprep.subr.mxu0 0.0
        %422 = vmatpush1.msra.mxu0 0.0
        %423 = vmatprep.subr.mxu0 0.0
        %424 = vmatpush1.msra.mxu0 0.0
        %425 = vmatprep.subr.mxu0 0.0
        %426 = vmatpush1.msra.mxu0 0.0
        %427 = vmatprep.subr.mxu0 0.0
        %428 = vmatpush1.msra.mxu0 0.0
        %429 = vmatprep.subr.mxu0 0.0
        %430 = vmatpush1.msra.mxu0 0.0
        %431 = vmatprep.subr.mxu0 0.0
        %432 = vmatpush1.msra.mxu0 0.0
        %433 = vmatprep.subr.mxu0 0.0
        %434 = vmatpush1.msra.mxu0 0.0
        %435 = vmatprep.subr.mxu0 0.0
        %436 = vmatpush1.msra.mxu0 0.0
        %437 = vmatprep.subr.mxu0 0.0
        %438 = vmatpush1.msra.mxu0 0.0
        %439 = vmatprep.subr.mxu0 0.0
        %440 = vmatpush1.msra.mxu0 0.0
        %441 = vmatprep.subr.mxu0 0.0
        %442 = vmatpush1.msra.mxu0 0.0
        %443 = vmatprep.subr.mxu0 0.0
        %444 = vmatpush1.msra.mxu0 0.0
        %445 = vmatprep.subr.mxu0 0.0
        %446 = vmatpush1.msra.mxu0 0.0
        %447 = vmatprep.mubr.f32.mxu0 0.0
        %448 = vmatmul.mubr.f32.gmra.mrb[0].mxu0 %v381
        %v449 = vpop.f32.mrb[0].mxu0
        %v450 = vadd.f32 %v376, %v449
        %v451 = vpop.f32.mrb[0].mxu0
        %452 = vdwg.mxu0
        %v453 = vld [vmem:[%s5] sm:$0x1]
        %v454 = vlaneseq
        %v455 = vshrl.u32 %v454, 7
        %v456 = vsub.s32 0, %v455
        %v457 = vrot.slane %v453, %v456
        %v458 = vadd.f32 %v450, %v457
        %v459 = vmax.f32 %v458, 0.0
        %v460 = vld [vmem:[#allocation5] sm:$0xff]
        %v461 = vld [vmem:[#allocation5 + $0x8] sm:$0xff]
        %v462 = vld [vmem:[#allocation5 + $0x10] sm:$0xff]
        %v463 = vld [vmem:[#allocation5 + $0x18] sm:$0xff]
        %v464 = vld [vmem:[#allocation5 + $0x20] sm:$0xff]
        %v465 = vld [vmem:[#allocation5 + $0x28] sm:$0xff]
        %v466 = vld [vmem:[#allocation5 + $0x30] sm:$0xff]
        %v467 = vld [vmem:[#allocation5 + $0x38] sm:$0xff]
        %v468 = vld [vmem:[#allocation5 + $0x40] sm:$0xff]
        %v469 = vld [vmem:[#allocation5 + $0x48] sm:$0xff]
        %v470 = vld [vmem:[#allocation5 + $0x50] sm:$0xff]
        %v471 = vld [vmem:[#allocation5 + $0x58] sm:$0xff]
        %v472 = vld [vmem:[#allocation5 + $0x60] sm:$0xff]
        %v473 = vld [vmem:[#allocation5 + $0x68] sm:$0xff]
        %v474 = vld [vmem:[#allocation5 + $0x70] sm:$0xff]
        %v475 = vld [vmem:[#allocation5 + $0x78] sm:$0xff]
        %v476 = vld [vmem:[%s5 + $0x1] sm:$0x1]
        %v477 = vlaneseq
        %v478 = vshrl.u32 %v477, 7
        %v479 = vsub.s32 0, %v478
        %v480 = vrot.slane %v476, %v479
        %481 = vmatprep.subr.mxu0 0.0
        %482 = vmatpush1.msra.mxu0 %v460
        %483 = vmatprep.subr.mxu0 0.0
        %484 = vmatpush1.msra.mxu0 %v461
        %485 = vmatprep.subr.mxu0 0.0
        %486 = vmatpush1.msra.mxu0 %v462
        %487 = vmatprep.subr.mxu0 0.0
        %488 = vmatpush1.msra.mxu0 %v463
        %489 = vmatprep.subr.mxu0 0.0
        %490 = vmatpush1.msra.mxu0 %v464
        %491 = vmatprep.subr.mxu0 0.0
        %492 = vmatpush1.msra.mxu0 %v465
        %493 = vmatprep.subr.mxu0 0.0
        %494 = vmatpush1.msra.mxu0 %v466
        %495 = vmatprep.subr.mxu0 0.0
        %496 = vmatpush1.msra.mxu0 %v467
        %497 = vmatprep.subr.mxu0 0.0
        %498 = vmatpush1.msra.mxu0 %v468
        %499 = vmatprep.subr.mxu0 0.0
        %500 = vmatpush1.msra.mxu0 %v469
        %501 = vmatprep.subr.mxu0 0.0
        %502 = vmatpush1.msra.mxu0 %v470
        %503 = vmatprep.subr.mxu0 0.0
        %504 = vmatpush1.msra.mxu0 %v471
        %505 = vmatprep.subr.mxu0 0.0
        %506 = vmatpush1.msra.mxu0 %v472
        %507 = vmatprep.subr.mxu0 0.0
        %508 = vmatpush1.msra.mxu0 %v473
        %509 = vmatprep.subr.mxu0 0.0
        %510 = vmatpush1.msra.mxu0 %v474
        %511 = vmatprep.subr.mxu0 0.0
        %512 = vmatpush1.msra.mxu0 %v475
        %513 = vmatprep.subr.mxu0 0.0
        %514 = vmatpush1.msra.mxu0 0.0
        %515 = vmatprep.subr.mxu0 0.0
        %516 = vmatpush1.msra.mxu0 0.0
        %517 = vmatprep.subr.mxu0 0.0
        %518 = vmatpush1.msra.mxu0 0.0
        %519 = vmatprep.subr.mxu0 0.0
        %520 = vmatpush1.msra.mxu0 0.0
        %521 = vmatprep.subr.mxu0 0.0
        %522 = vmatpush1.msra.mxu0 0.0
        %523 = vmatprep.subr.mxu0 0.0
        %524 = vmatpush1.msra.mxu0 0.0
        %525 = vmatprep.subr.mxu0 0.0
        %526 = vmatpush1.msra.mxu0 0.0
        %527 = vmatprep.subr.mxu0 0.0
        %528 = vmatpush1.msra.mxu0 0.0
        %529 = vmatprep.subr.mxu0 0.0
        %530 = vmatpush1.msra.mxu0 0.0
        %531 = vmatprep.subr.mxu0 0.0
        %532 = vmatpush1.msra.mxu0 0.0
        %533 = vmatprep.subr.mxu0 0.0
        %534 = vmatpush1.msra.mxu0 0.0
        %535 = vmatprep.subr.mxu0 0.0
        %536 = vmatpush1.msra.mxu0 0.0
        %537 = vmatprep.subr.mxu0 0.0
        %538 = vmatpush1.msra.mxu0 0.0
        %539 = vmatprep.subr.mxu0 0.0
        %540 = vmatpush1.msra.mxu0 0.0
        %541 = vmatprep.subr.mxu0 0.0
        %542 = vmatpush1.msra.mxu0 0.0
        %543 = vmatprep.subr.mxu0 0.0
        %544 = vmatpush1.msra.mxu0 0.0
        %545 = vmatprep.mubr.f32.mxu0 0.0
        %546 = vmatmul.mubr.f32.gmra.mrb[0].mxu0 %v459
        %v547 = vpop.f32.mrb[0].mxu0
        %v548 = vadd.f32 %v480, %v547
        %v549 = vpop.f32.mrb[0].mxu0
        %550 = vdwg.mxu0
        %v551 = vlaneseq
        %v552 = vand.u32 %v551, 127
        %vm553 = vcmp.lt.s32.totalorder %v552, 16
        %v554 = vmul.f32 %v548, 1.442695
        %v555 = vpow.pop %v554
        %v556 = vsel %vm553, %v548, %v555
        %557 = vst [vmem:[%s294] sm:$0xff] %v556
        %s558 = sand.u32 %s168, 1
        %s559 = scalar_lea.sflag [#allocation4], %s558
        %s560 = sand.u32 %s168, 1
        %s561 = smul.addr %s560, 8
        %s562 = scalar_lea.vmem [#allocation7], %s561
        // Predicated region
        $region53: #{tpu_custom_call.1} parent=43 // pred_check
          %p563 = pneg %p178
        $region54: #{tpu_custom_call.1} parent=43 // pred_check_branch
          %565 = sbr.rel (%p563) target = $region56
        $region55: #{tpu_custom_call.1} parent=43 // pred_region
          %s567 = ssub.s32 128, 128
          %568 = vsyncadd %s559, %s567
          %s569 = smul.addr %s24, 128
          %s570 = scalar_lea.hbm %s6, %s569
          %s572 = sshll.u32 %s562, 4
          %s573 = int_to_ptr.vmem [resolvable:$true] %s572
          %575 = dma.vmem_to_hbm [thread:$0]  %s573, 128, %s570, %s559
        $region56: #{tpu_custom_call.1} parent=43 // pred_fallthru
          _
      $region44: #{tpu_custom_call.1} parent=5 // pred_fallthru
        _
      %p576 = scmp.le.s32.totalorder 2, %s19
      // Predicated region
      $region57: #{tpu_custom_call.1} parent=5 // pred_check
        %p577 = pneg %p576
      $region58: #{tpu_custom_call.1} parent=5 // pred_check_branch
        %579 = sbr.rel (%p577) target = $region60
      $region59: #{tpu_custom_call.1} parent=5 // pred_region
        %s580 = ssub.s32 %s19, 2
        // Predicated region
        $region61: #{tpu_custom_call.1} parent=59 // pred_check
          %p581 = pneg %p184
        $region62: #{tpu_custom_call.1} parent=59 // pred_check_branch
          %583 = sbr.rel (%p581) target = $region64
        $region63: #{tpu_custom_call.1} parent=59 // pred_region
          %s584 = sand.u32 %s169, 1
          %s585 = scalar_lea.sflag [#allocation4], %s584
          %s586 = sand.u32 %s169, 1
          %s587 = smul.addr %s586, 8
          %s588 = scalar_lea.vmem [#allocation7], %s587
          %589 = dma.done %s585, 128
        $region64: #{tpu_custom_call.1} parent=59 // pred_fallthru
          _
      $region60: #{tpu_custom_call.1} parent=5 // pred_fallthru
        _
    $region6: #{tpu_custom_call.1} parent=1 // loop_footer
      %s23 = sadd.s32 1, %s19
    $region7: #{tpu_custom_call.1} parent=1 // loop_footer_branch
      %18 = sbr.rel target = $region3
    $region8: #{tpu_custom_call.1} parent=1 // loop_exit
      _
    %590 = vsyncpa [#allocation3], 1
    %s591 = scalar_lea.sflag [#allocation3], 1
    %592 = vsyncpa %s591, 1
    %593 = vsyncpa [#allocation6], 1
    %594 = vsyncpa [#allocation4], 1
    %s595 = scalar_lea.sflag [#allocation4], 1
    %596 = vsyncpa %s595, 1

</llo_original>
